<compile_context>
chip_gen: v7x
topology: tpu7x:2x2x1
jax: 0.10.0
libtpu: 0.0.40
codegen_flags: <defaults>
</compile_context>

<pallas_src>
import functools

import jax
import jax.numpy as jnp
from jax import lax
from jax.experimental import pallas as pl
from jax.experimental.pallas import tpu as pltpu

_BN_EPS = 1e-5


# ----------------------------------------------------------------------------
# Fused Pallas kernel: pw1+BN+ReLU6 -> dw3x3+BN+ReLU6 -> pw3+BN (+residual)
# Layout inside the kernel: (channels, flat padded spatial) — spatial on lanes.
# ----------------------------------------------------------------------------
def _fused_inverted_residual_kernel(*refs, ksize, wp, h, pad, expand,
                                    res_connect):
    if expand:
        (x_ref, mask_ref, w1_ref, b1_ref, wd_ref, b2_ref, w3_ref, b3_ref,
         o_ref, h1_scr) = refs
    else:
        (x_ref, wd_ref, b2_ref, w3_ref, b3_ref, o_ref) = refs

    n_rows = h * wp                      # flat output positions (junk cols cut in wrapper)

    # ---- Stage 1: 1x1 expansion (BN scale pre-folded into w1) + ReLU6 ------
    if expand:
        x = x_ref[...]                                        # (cin, P) f32
        h1 = jnp.dot(w1_ref[...], x.astype(jnp.bfloat16),
                     preferred_element_type=jnp.float32)      # (cexp, P) f32
        h1 = jnp.clip(h1 + b1_ref[...], 0.0, 6.0)
        # Re-zero the spatial border (and guard row) so the depthwise conv
        # sees true zero padding of the *expanded* activation.
        h1 = h1 * mask_ref[...]
        h1_scr[...] = h1.astype(jnp.bfloat16)                 # bf16 VMEM scratch
        tap_src = h1_scr
    else:
        tap_src = x_ref                                       # padding already zero

    # ---- Stage 2: 3x3 depthwise conv (stride 1) + BN + ReLU6 ---------------
    # Tap (kh, kw) == lane offset kh*wp + kw read straight from the VMEM
    # scratch (or the input ref) — no full-tile relayout copies.
    wd = wd_ref[...]                                          # (cexp, 9) f32
    cexp = wd.shape[0]
    acc = jnp.zeros((cexp, n_rows), jnp.float32)
    for kh in range(ksize):
        for kw in range(ksize):
            k = kh * ksize + kw
            off = kh * wp + kw
            tap = tap_src[:, pl.ds(off, n_rows)].astype(jnp.float32)
            wk = lax.slice(wd, (0, k), (cexp, k + 1))         # (cexp, 1)
            acc = acc + tap * wk
    h2 = jnp.clip(acc + b2_ref[...], 0.0, 6.0)                # (cexp, n_rows)

    # ---- Stage 3: 1x1 projection (BN scale pre-folded) (+ residual) --------
    y = jnp.dot(w3_ref[...], h2.astype(jnp.bfloat16),
                preferred_element_type=jnp.float32)           # (cout, n_rows)
    y = y + b3_ref[...]
    if res_connect:
        res_off = pad * wp + pad
        y = y + x_ref[:, pl.ds(res_off, n_rows)].astype(jnp.float32)

    o_ref[...] = y.astype(o_ref.dtype)                        # lane-dense store


# ----------------------------------------------------------------------------
# BN folding helper (eval-mode BatchNorm)
# ----------------------------------------------------------------------------
def _fold_bn(gamma, beta, mean, var):
    scale = gamma / jnp.sqrt(var + _BN_EPS)
    bias = beta - mean * scale
    return scale, bias


# ----------------------------------------------------------------------------
# Wrapper: NCHW in / NCHW out, builds specs and calls the fused kernel
# ----------------------------------------------------------------------------
def inverted_residual_forward(x_nchw, params, *, in_channels, out_channels,
                              stride, expansion_factor):
    ksize = 3
    pad = (ksize - 1) // 2
    expand = expansion_factor != 1
    res_connect = (in_channels == out_channels) and (stride == 1)

    x = x_nchw.astype(jnp.float32)
    n, cin, h, w_sp = x.shape
    wp = w_sp + 2 * pad
    hp = h + 2 * pad + 1          # one extra zero guard row keeps tap slices in bounds
    P = hp * wp                   # flat padded spatial positions per image
    n_rows = h * wp               # flat output positions (w valid cols per row)

    # Channel-major, flat padded spatial (no NCHW<->NHWC transposes needed).
    xp = jnp.pad(x, ((0, 0), (0, 0), (pad, pad + 1), (pad, pad)))
    xf = xp.reshape(n, cin, P)

    # Fold eval-mode BN scales into the conv weights; biases stay separate adds.
    s2, b2 = _fold_bn(*params["bn2"])
    wd = (params["dw_w"] * s2).reshape(ksize * ksize, -1).T          # (cexp, 9) f32
    s3, b3 = _fold_bn(*params["bn3"])
    w3t = (params["pw3_w"] * s3[None, :]).T.astype(jnp.bfloat16)     # (cout, cexp)
    cexp = wd.shape[0]
    cout = w3t.shape[0]

    args = [xf]
    in_specs = [pl.BlockSpec((None, cin, P), lambda b: (b, 0, 0))]
    scratch_shapes = []
    if expand:
        s1, b1 = _fold_bn(*params["bn1"])
        w1t = (params["pw1_w"] * s1[None, :]).T.astype(jnp.bfloat16)  # (cexp, cin)
        # Lane-dense (1, P) interior mask over the flattened padded image.
        rr = jnp.arange(hp)[:, None]
        cc = jnp.arange(wp)[None, :]
        interior = ((rr >= pad) & (rr < pad + h) &
                    (cc >= pad) & (cc < pad + w_sp))
        mask = interior.astype(jnp.float32).reshape(1, P)
        args += [mask, w1t, b1.reshape(cexp, 1)]
        in_specs += [
            pl.BlockSpec((1, P), lambda b: (0, 0)),
            pl.BlockSpec((cexp, cin), lambda b: (0, 0)),
            pl.BlockSpec((cexp, 1), lambda b: (0, 0)),
        ]
        scratch_shapes = [pltpu.VMEM((cexp, P), jnp.bfloat16)]
    args += [wd, b2.reshape(cexp, 1), w3t, b3.reshape(cout, 1)]
    in_specs += [
        pl.BlockSpec((cexp, ksize * ksize), lambda b: (0, 0)),
        pl.BlockSpec((cexp, 1), lambda b: (0, 0)),
        pl.BlockSpec((cout, cexp), lambda b: (0, 0)),
        pl.BlockSpec((cout, 1), lambda b: (0, 0)),
    ]

    kernel = functools.partial(
        _fused_inverted_residual_kernel,
        ksize=ksize, wp=wp, h=h, pad=pad,
        expand=expand, res_connect=res_connect)

    y_flat = pl.pallas_call(
        kernel,
        out_shape=jax.ShapeDtypeStruct((n, cout, n_rows), jnp.float32),
        grid=(n,),
        in_specs=in_specs,
        out_specs=pl.BlockSpec((None, cout, n_rows), lambda b: (b, 0, 0)),
        scratch_shapes=scratch_shapes,
        compiler_params=pltpu.CompilerParams(
            dimension_semantics=("parallel",),
            vmem_limit_bytes=32 * 1024 * 1024),
    )(*args)

    # Un-flatten: each group of wp lane positions holds w valid output columns.
    y = y_flat.reshape(n, cout, h, wp)[:, :, :, :w_sp]
    if stride > 1:
        # TODO(synk): subsampling outside the kernel; see header TODO.
        y = y[:, :, ::stride, ::stride]
    return y                                                   # already NCHW


# ----------------------------------------------------------------------------
# Deterministic synthetic parameters (matches the PyTorch module structure)
# ----------------------------------------------------------------------------
def make_params(key, in_channels, out_channels, expansion_factor):
    c_exp = int(in_channels * expansion_factor)
    ks = jax.random.split(key, 12)
    params = {}
    if expansion_factor != 1:
        params["pw1_w"] = jax.random.normal(ks[0], (in_channels, c_exp), jnp.float32) * 0.1
        params["bn1"] = (
            jax.random.normal(ks[1], (c_exp,), jnp.float32) * 0.1 + 1.0,   # gamma
            jax.random.normal(ks[2], (c_exp,), jnp.float32) * 0.1,         # beta
            jax.random.normal(ks[3], (c_exp,), jnp.float32) * 0.1,         # running mean
            jax.random.uniform(ks[4], (c_exp,), jnp.float32, 0.5, 1.5),    # running var
        )
    params["dw_w"] = jax.random.normal(ks[5], (3, 3, c_exp), jnp.float32) * 0.1
    params["bn2"] = (
        jax.random.normal(ks[6], (c_exp,), jnp.float32) * 0.1 + 1.0,
        jax.random.normal(ks[7], (c_exp,), jnp.float32) * 0.1,
        jax.random.normal(ks[8], (c_exp,), jnp.float32) * 0.1,
        jax.random.uniform(ks[9], (c_exp,), jnp.float32, 0.5, 1.5),
    )
    params["pw3_w"] = jax.random.normal(ks[10], (c_exp, out_channels), jnp.float32) * 0.1
    params["bn3"] = (
        jnp.linspace(0.9, 1.1, out_channels, dtype=jnp.float32),
        jnp.linspace(-0.1, 0.1, out_channels, dtype=jnp.float32),
        jnp.linspace(-0.05, 0.05, out_channels, dtype=jnp.float32),
        jnp.linspace(0.8, 1.2, out_channels, dtype=jnp.float32),
    )
    return params


# ----------------------------------------------------------------------------
# Plain-JAX reference (faithful f32 semantics of the PyTorch module, eval BN)
# ----------------------------------------------------------------------------
def reference_forward(x_nchw, params, *, in_channels, out_channels,
                      stride, expansion_factor):
    res_connect = (in_channels == out_channels) and (stride == 1)
    x = jnp.transpose(x_nchw, (0, 2, 3, 1)).astype(jnp.float32)   # NHWC
    initial = x

    def bn(y, p):
        g, b, m, v = p
        return (y - m) / jnp.sqrt(v + _BN_EPS) * g + b

    if expansion_factor != 1:
        x = jnp.einsum("nhwc,ce->nhwe", x, params["pw1_w"],
                       precision=lax.Precision.HIGHEST)
        x = jnp.clip(bn(x, params["bn1"]), 0.0, 6.0)

    c_exp = x.shape[-1]
    dw = params["dw_w"].reshape(3, 3, 1, c_exp)                    # HWIO, I=1
    x = lax.conv_general_dilated(
        x, dw, window_strides=(stride, stride), padding=((1, 1), (1, 1)),
        dimension_numbers=("NHWC", "HWIO", "NHWC"),
        feature_group_count=c_exp, precision=lax.Precision.HIGHEST)
    x = jnp.clip(bn(x, params["bn2"]), 0.0, 6.0)

    x = jnp.einsum("nhwc,ce->nhwe", x, params["pw3_w"],
                   precision=lax.Precision.HIGHEST)
    x = bn(x, params["bn3"])
    if res_connect:
        x = x + initial
    return jnp.transpose(x, (0, 3, 1, 2))


# ----------------------------------------------------------------------------
if __name__ == "__main__":
    # Module config: in=4, out=4, stride=1, expansion_factor=2 -> residual path.
    IN_C, OUT_C, STRIDE, EXP = 4, 4, 1, 2
    N, H, W = 2, 16, 16

    key = jax.random.PRNGKey(0)
    k_x, k_p = jax.random.split(key)
    x = jax.random.normal(k_x, (N, IN_C, H, W), jnp.float32)       # NCHW input
    params = make_params(k_p, IN_C, OUT_C, EXP)

    fwd = jax.jit(functools.partial(
        inverted_residual_forward, in_channels=IN_C, out_channels=OUT_C,
        stride=STRIDE, expansion_factor=EXP))
    out = jax.block_until_ready(fwd(x, params))

    ref = jax.block_until_ready(reference_forward(
        x, params, in_channels=IN_C, out_channels=OUT_C,
        stride=STRIDE, expansion_factor=EXP))

    assert out.shape == (N, OUT_C, H, W), out.shape
    # bf16 MXU operands (per perf review) -> relaxed vs the f32 reference.
    max_err = float(jnp.max(jnp.abs(out - ref)))
    assert jnp.allclose(out, ref, atol=5e-2, rtol=5e-2), max_err

    print("KERNEL_OK")
</pallas_src>

<mosaic_0001>
module attributes {stable_mosaic.version = 11 : i64} {
  func.func @_fused_inverted_residual_kernel(%arg0: i32, %arg1: memref<1x4x342xf32, #tpu.memory_space<vmem>>, %arg2: memref<1x342xf32, #tpu.memory_space<vmem>>, %arg3: memref<8x4xbf16, #tpu.memory_space<vmem>>, %arg4: memref<8x1xf32, #tpu.memory_space<vmem>>, %arg5: memref<8x9xf32, #tpu.memory_space<vmem>>, %arg6: memref<8x1xf32, #tpu.memory_space<vmem>>, %arg7: memref<4x8xbf16, #tpu.memory_space<vmem>>, %arg8: memref<4x1xf32, #tpu.memory_space<vmem>>, %arg9: memref<1x4x288xf32, #tpu.memory_space<vmem>>, %arg10: memref<8x342xbf16, #tpu.memory_space<vmem>>) attributes {dimension_semantics = [#tpu.dimension_semantics<parallel>], iteration_bounds = array<i64: 2>, scalar_prefetch = 0 : i64, scratch_operands = 1 : i64, tpu.core_type = #tpu.core_type<tc>, window_params = [{transform_indices = @transform_0, window_bounds = array<i64: 1, 4, 342>}, {pipeline_mode = #tpu.pipeline_mode<synchronous>, transform_indices = @transform_1, window_bounds = array<i64: 1, 342>}, {pipeline_mode = #tpu.pipeline_mode<synchronous>, transform_indices = @transform_2, window_bounds = array<i64: 8, 4>}, {pipeline_mode = #tpu.pipeline_mode<synchronous>, transform_indices = @transform_3, window_bounds = array<i64: 8, 1>}, {pipeline_mode = #tpu.pipeline_mode<synchronous>, transform_indices = @transform_4, window_bounds = array<i64: 8, 9>}, {pipeline_mode = #tpu.pipeline_mode<synchronous>, transform_indices = @transform_5, window_bounds = array<i64: 8, 1>}, {pipeline_mode = #tpu.pipeline_mode<synchronous>, transform_indices = @transform_6, window_bounds = array<i64: 4, 8>}, {pipeline_mode = #tpu.pipeline_mode<synchronous>, transform_indices = @transform_7, window_bounds = array<i64: 4, 1>}, {transform_indices = @transform_8, window_bounds = array<i64: 1, 4, 288>}]} {
    %c0 = arith.constant 0 : index
    %c0_0 = arith.constant 0 : index
    %c0_1 = arith.constant 0 : index
    %0 = vector.load %arg1[%c0, %c0_0, %c0_1] : memref<1x4x342xf32, #tpu.memory_space<vmem>>, vector<1x4x342xf32>
    %1 = vector.shape_cast %0 : vector<1x4x342xf32> to vector<4x342xf32>
    %c0_2 = arith.constant 0 : index
    %c0_3 = arith.constant 0 : index
    %2 = vector.load %arg3[%c0_2, %c0_3] : memref<8x4xbf16, #tpu.memory_space<vmem>>, vector<8x4xbf16>
    %3 = arith.truncf %1 : vector<4x342xf32> to vector<4x342xbf16>
    %cst = arith.constant dense<0.000000e+00> : vector<8x342xf32>
    %4 = tpu.matmul %2, %3, %cst {dimension_numbers = #tpu.dot_dimension_numbers<[1], [0], [0], [1], [0, 0, 1, 1], [], []>} : vector<8x4xbf16>, vector<4x342xbf16>, vector<8x342xf32> -> vector<8x342xf32>
    %c0_4 = arith.constant 0 : index
    %c0_5 = arith.constant 0 : index
    %5 = vector.load %arg4[%c0_4, %c0_5] : memref<8x1xf32, #tpu.memory_space<vmem>>, vector<8x1xf32>
    %6 = vector.broadcast %5 : vector<8x1xf32> to vector<8x342xf32>
    %7 = arith.addf %4, %6 : vector<8x342xf32>
    %cst_6 = arith.constant 0.000000e+00 : f32
    %cst_7 = arith.constant 6.000000e+00 : f32
    %8 = vector.broadcast %cst_6 : f32 to vector<8x342xf32>
    %9 = arith.maximumf %8, %7 : vector<8x342xf32>
    %10 = vector.broadcast %cst_7 : f32 to vector<8x342xf32>
    %11 = arith.minimumf %10, %9 : vector<8x342xf32>
    %c0_8 = arith.constant 0 : index
    %c0_9 = arith.constant 0 : index
    %12 = vector.load %arg2[%c0_8, %c0_9] : memref<1x342xf32, #tpu.memory_space<vmem>>, vector<1x342xf32>
    %13 = vector.broadcast %12 : vector<1x342xf32> to vector<8x342xf32>
    %14 = arith.mulf %11, %13 : vector<8x342xf32>
    %15 = arith.truncf %14 : vector<8x342xf32> to vector<8x342xbf16>
    %c0_10 = arith.constant 0 : index
    %c0_11 = arith.constant 0 : index
    %16 = vector.load %arg10[%c0_10, %c0_11] : memref<8x342xbf16, #tpu.memory_space<vmem>>, vector<8x342xbf16>
    tpu.vector_store %arg10[%c0_10, %c0_11], %15 {strides = array<i32>} : memref<8x342xbf16, #tpu.memory_space<vmem>>, vector<8x342xbf16>,
    %c0_12 = arith.constant 0 : index
    %c0_13 = arith.constant 0 : index
    %17 = vector.load %arg5[%c0_12, %c0_13] : memref<8x9xf32, #tpu.memory_space<vmem>>, vector<8x9xf32>
    %cst_14 = arith.constant 0.000000e+00 : f32
    %18 = vector.broadcast %cst_14 : f32 to vector<8x288xf32>
    %c0_15 = arith.constant 0 : index
    %c0_16 = arith.constant 0 : index
    %19 = vector.load %arg10[%c0_15, %c0_16] : memref<8x342xbf16, #tpu.memory_space<vmem>>, vector<8x288xbf16>
    %20 = arith.extf %19 : vector<8x288xbf16> to vector<8x288xf32>
    %21 = vector.extract_strided_slice %17 {offsets = [0, 0], sizes = [8, 1], strides = [1, 1]} : vector<8x9xf32> to vector<8x1xf32>
    %22 = vector.broadcast %21 : vector<8x1xf32> to vector<8x288xf32>
    %23 = arith.mulf %20, %22 : vector<8x288xf32>
    %24 = arith.addf %18, %23 : vector<8x288xf32>
    %c0_17 = arith.constant 0 : index
    %c1 = arith.constant 1 : index
    %25 = vector.load %arg10[%c0_17, %c1] : memref<8x342xbf16, #tpu.memory_space<vmem>>, vector<8x288xbf16>
    %26 = arith.extf %25 : vector<8x288xbf16> to vector<8x288xf32>
    %27 = vector.extract_strided_slice %17 {offsets = [0, 1], sizes = [8, 1], strides = [1, 1]} : vector<8x9xf32> to vector<8x1xf32>
    %28 = vector.broadcast %27 : vector<8x1xf32> to vector<8x288xf32>
    %29 = arith.mulf %26, %28 : vector<8x288xf32>
    %30 = arith.addf %24, %29 : vector<8x288xf32>
    %c0_18 = arith.constant 0 : index
    %c2 = arith.constant 2 : index
    %31 = vector.load %arg10[%c0_18, %c2] : memref<8x342xbf16, #tpu.memory_space<vmem>>, vector<8x288xbf16>
    %32 = arith.extf %31 : vector<8x288xbf16> to vector<8x288xf32>
    %33 = vector.extract_strided_slice %17 {offsets = [0, 2], sizes = [8, 1], strides = [1, 1]} : vector<8x9xf32> to vector<8x1xf32>
    %34 = vector.broadcast %33 : vector<8x1xf32> to vector<8x288xf32>
    %35 = arith.mulf %32, %34 : vector<8x288xf32>
    %36 = arith.addf %30, %35 : vector<8x288xf32>
    %c0_19 = arith.constant 0 : index
    %c18 = arith.constant 18 : index
    %37 = vector.load %arg10[%c0_19, %c18] : memref<8x342xbf16, #tpu.memory_space<vmem>>, vector<8x288xbf16>
    %38 = arith.extf %37 : vector<8x288xbf16> to vector<8x288xf32>
    %39 = vector.extract_strided_slice %17 {offsets = [0, 3], sizes = [8, 1], strides = [1, 1]} : vector<8x9xf32> to vector<8x1xf32>
    %40 = vector.broadcast %39 : vector<8x1xf32> to vector<8x288xf32>
    %41 = arith.mulf %38, %40 : vector<8x288xf32>
    %42 = arith.addf %36, %41 : vector<8x288xf32>
    %c0_20 = arith.constant 0 : index
    %c19 = arith.constant 19 : index
    %43 = vector.load %arg10[%c0_20, %c19] : memref<8x342xbf16, #tpu.memory_space<vmem>>, vector<8x288xbf16>
    %44 = arith.extf %43 : vector<8x288xbf16> to vector<8x288xf32>
    %45 = vector.extract_strided_slice %17 {offsets = [0, 4], sizes = [8, 1], strides = [1, 1]} : vector<8x9xf32> to vector<8x1xf32>
    %46 = vector.broadcast %45 : vector<8x1xf32> to vector<8x288xf32>
    %47 = arith.mulf %44, %46 : vector<8x288xf32>
    %48 = arith.addf %42, %47 : vector<8x288xf32>
    %c0_21 = arith.constant 0 : index
    %c20 = arith.constant 20 : index
    %49 = vector.load %arg10[%c0_21, %c20] : memref<8x342xbf16, #tpu.memory_space<vmem>>, vector<8x288xbf16>
    %50 = arith.extf %49 : vector<8x288xbf16> to vector<8x288xf32>
    %51 = vector.extract_strided_slice %17 {offsets = [0, 5], sizes = [8, 1], strides = [1, 1]} : vector<8x9xf32> to vector<8x1xf32>
    %52 = vector.broadcast %51 : vector<8x1xf32> to vector<8x288xf32>
    %53 = arith.mulf %50, %52 : vector<8x288xf32>
    %54 = arith.addf %48, %53 : vector<8x288xf32>
    %c0_22 = arith.constant 0 : index
    %c36 = arith.constant 36 : index
    %55 = vector.load %arg10[%c0_22, %c36] : memref<8x342xbf16, #tpu.memory_space<vmem>>, vector<8x288xbf16>
    %56 = arith.extf %55 : vector<8x288xbf16> to vector<8x288xf32>
    %57 = vector.extract_strided_slice %17 {offsets = [0, 6], sizes = [8, 1], strides = [1, 1]} : vector<8x9xf32> to vector<8x1xf32>
    %58 = vector.broadcast %57 : vector<8x1xf32> to vector<8x288xf32>
    %59 = arith.mulf %56, %58 : vector<8x288xf32>
    %60 = arith.addf %54, %59 : vector<8x288xf32>
    %c0_23 = arith.constant 0 : index
    %c37 = arith.constant 37 : index
    %61 = vector.load %arg10[%c0_23, %c37] : memref<8x342xbf16, #tpu.memory_space<vmem>>, vector<8x288xbf16>
    %62 = arith.extf %61 : vector<8x288xbf16> to vector<8x288xf32>
    %63 = vector.extract_strided_slice %17 {offsets = [0, 7], sizes = [8, 1], strides = [1, 1]} : vector<8x9xf32> to vector<8x1xf32>
    %64 = vector.broadcast %63 : vector<8x1xf32> to vector<8x288xf32>
    %65 = arith.mulf %62, %64 : vector<8x288xf32>
    %66 = arith.addf %60, %65 : vector<8x288xf32>
    %c0_24 = arith.constant 0 : index
    %c38 = arith.constant 38 : index
    %67 = vector.load %arg10[%c0_24, %c38] : memref<8x342xbf16, #tpu.memory_space<vmem>>, vector<8x288xbf16>
    %68 = arith.extf %67 : vector<8x288xbf16> to vector<8x288xf32>
    %69 = vector.extract_strided_slice %17 {offsets = [0, 8], sizes = [8, 1], strides = [1, 1]} : vector<8x9xf32> to vector<8x1xf32>
    %70 = vector.broadcast %69 : vector<8x1xf32> to vector<8x288xf32>
    %71 = arith.mulf %68, %70 : vector<8x288xf32>
    %72 = arith.addf %66, %71 : vector<8x288xf32>
    %c0_25 = arith.constant 0 : index
    %c0_26 = arith.constant 0 : index
    %73 = vector.load %arg6[%c0_25, %c0_26] : memref<8x1xf32, #tpu.memory_space<vmem>>, vector<8x1xf32>
    %74 = vector.broadcast %73 : vector<8x1xf32> to vector<8x288xf32>
    %75 = arith.addf %72, %74 : vector<8x288xf32>
    %cst_27 = arith.constant 0.000000e+00 : f32
    %cst_28 = arith.constant 6.000000e+00 : f32
    %76 = vector.broadcast %cst_27 : f32 to vector<8x288xf32>
    %77 = arith.maximumf %76, %75 : vector<8x288xf32>
    %78 = vector.broadcast %cst_28 : f32 to vector<8x288xf32>
    %79 = arith.minimumf %78, %77 : vector<8x288xf32>
    %c0_29 = arith.constant 0 : index
    %c0_30 = arith.constant 0 : index
    %80 = vector.load %arg7[%c0_29, %c0_30] : memref<4x8xbf16, #tpu.memory_space<vmem>>, vector<4x8xbf16>
    %81 = arith.truncf %79 : vector<8x288xf32> to vector<8x288xbf16>
    %cst_31 = arith.constant dense<0.000000e+00> : vector<4x288xf32>
    %82 = tpu.matmul %80, %81, %cst_31 {dimension_numbers = #tpu.dot_dimension_numbers<[1], [0], [0], [1], [0, 0, 1, 1], [], []>} : vector<4x8xbf16>, vector<8x288xbf16>, vector<4x288xf32> -> vector<4x288xf32>
    %c0_32 = arith.constant 0 : index
    %c0_33 = arith.constant 0 : index
    %83 = vector.load %arg8[%c0_32, %c0_33] : memref<4x1xf32, #tpu.memory_space<vmem>>, vector<4x1xf32>
    %84 = vector.broadcast %83 : vector<4x1xf32> to vector<4x288xf32>
    %85 = arith.addf %82, %84 : vector<4x288xf32>
    %c0_34 = arith.constant 0 : index
    %c0_35 = arith.constant 0 : index
    %c19_36 = arith.constant 19 : index
    %86 = vector.load %arg1[%c0_34, %c0_35, %c19_36] : memref<1x4x342xf32, #tpu.memory_space<vmem>>, vector<1x4x288xf32>
    %87 = vector.shape_cast %86 : vector<1x4x288xf32> to vector<4x288xf32>
    %88 = arith.addf %85, %87 : vector<4x288xf32>
    %c0_37 = arith.constant 0 : index
    %c0_38 = arith.constant 0 : index
    %c0_39 = arith.constant 0 : index
    %89 = vector.load %arg9[%c0_37, %c0_38, %c0_39] : memref<1x4x288xf32, #tpu.memory_space<vmem>>, vector<1x4x288xf32>
    %90 = vector.shape_cast %89 : vector<1x4x288xf32> to vector<4x288xf32>
    %91 = vector.shape_cast %88 : vector<4x288xf32> to vector<1x4x288xf32>
    tpu.vector_store %arg9[%c0_37, %c0_38, %c0_39], %91 {strides = array<i32>} : memref<1x4x288xf32, #tpu.memory_space<vmem>>, vector<1x4x288xf32>,
    return
  }
  func.func @transform_0(%arg0: i32) -> (i32, i32, i32) {
    %c0_i32 = arith.constant 0 : i32
    %c0_i32_0 = arith.constant 0 : i32
    %c0_i32_1 = arith.constant 0 : i32
    return %arg0, %c0_i32, %c0_i32_0 : i32, i32, i32
  }
  func.func @transform_1(%arg0: i32) -> (i32, i32) {
    %c0_i32 = arith.constant 0 : i32
    %c0_i32_0 = arith.constant 0 : i32
    %c0_i32_1 = arith.constant 0 : i32
    return %c0_i32, %c0_i32_0 : i32, i32
  }
  func.func @transform_2(%arg0: i32) -> (i32, i32) {
    %c0_i32 = arith.constant 0 : i32
    %c0_i32_0 = arith.constant 0 : i32
    %c0_i32_1 = arith.constant 0 : i32
    return %c0_i32, %c0_i32_0 : i32, i32
  }
  func.func @transform_3(%arg0: i32) -> (i32, i32) {
    %c0_i32 = arith.constant 0 : i32
    %c0_i32_0 = arith.constant 0 : i32
    %c0_i32_1 = arith.constant 0 : i32
    return %c0_i32, %c0_i32_0 : i32, i32
  }
  func.func @transform_4(%arg0: i32) -> (i32, i32) {
    %c0_i32 = arith.constant 0 : i32
    %c0_i32_0 = arith.constant 0 : i32
    %c0_i32_1 = arith.constant 0 : i32
    return %c0_i32, %c0_i32_0 : i32, i32
  }
  func.func @transform_5(%arg0: i32) -> (i32, i32) {
    %c0_i32 = arith.constant 0 : i32
    %c0_i32_0 = arith.constant 0 : i32
    %c0_i32_1 = arith.constant 0 : i32
    return %c0_i32, %c0_i32_0 : i32, i32
  }
  func.func @transform_6(%arg0: i32) -> (i32, i32) {
    %c0_i32 = arith.constant 0 : i32
    %c0_i32_0 = arith.constant 0 : i32
    %c0_i32_1 = arith.constant 0 : i32
    return %c0_i32, %c0_i32_0 : i32, i32
  }
  func.func @transform_7(%arg0: i32) -> (i32, i32) {
    %c0_i32 = arith.constant 0 : i32
    %c0_i32_0 = arith.constant 0 : i32
    %c0_i32_1 = arith.constant 0 : i32
    return %c0_i32, %c0_i32_0 : i32, i32
  }
  func.func @transform_8(%arg0: i32) -> (i32, i32, i32) {
    %c0_i32 = arith.constant 0 : i32
    %c0_i32_0 = arith.constant 0 : i32
    %c0_i32_1 = arith.constant 0 : i32
    return %arg0, %c0_i32, %c0_i32_0 : i32, i32, i32
  }
}

</mosaic_0001>

<llo_original>
// kernel: inverted_residual_forward.1
$region0: #{inverted_residual_forward.1}
  #allocation0 [shape = 'u32[]', space=smem, size = 0x4, offset = 0x4, fixed_abs, tag = 'smem constant byte address 0x4 - core index']
  #allocation1 [shape = 'u32[144,128]{1,0:T(1,128)}', space=vmem, size = 0x12000, scoped, tag = 'internal scratch']
  #allocation2 [shape = 'bf16[8,342]{1,0:T(8,128)(2,1)}', space=vmem, size = 0x1800, scoped, tag = 'scratch operand']
  %s0 = inlined_call_operand.vmem [shape: f32[2,4,342], index: 0, kind: input, shape index: {}]
  %s1 = inlined_call_operand.vmem [shape: f32[1,342], index: 1, kind: input, shape index: {}]
  %s2 = inlined_call_operand.vmem [shape: bf16[8,4], index: 2, kind: input, shape index: {}]
  %s3 = inlined_call_operand.vmem [shape: f32[8,1], index: 3, kind: input, shape index: {}]
  %s4 = inlined_call_operand.vmem [shape: f32[8,9], index: 4, kind: input, shape index: {}]
  %s5 = inlined_call_operand.vmem [shape: f32[8,1], index: 5, kind: input, shape index: {}]
  %s6 = inlined_call_operand.vmem [shape: bf16[4,8], index: 6, kind: input, shape index: {}]
  %s7 = inlined_call_operand.vmem [shape: f32[4,1], index: 7, kind: input, shape index: {}]
  %s8 = inlined_call_operand.vmem [shape: f32[2,4,288], index: 8, kind: output, shape index: {}]
  %s9 = sld [smem:[#allocation0]]
  $region65: #{inverted_residual_forward.1} parent=0
    _
  %s11 = ssub.s32 1, %s9
  %s12 = scalar_select 0, %s11, %s9
  loop: start=0, step=1, limit=4
  $region2: #{inverted_residual_forward.1} parent=0 // loop_pre_header
    _
  $region3: #{inverted_residual_forward.1} parent=0 // loop_header
    %s14 = sphi 0, %s18
    %p15 = scmp.ge.s32.totalorder %s14, 4
    %s24 = sphi 0, %s26
    %s27 = sphi 0, %s24
    %s28 = sphi 0, %s27
    %s44 = sphi 0, %s28
    %s48 = sphi 0, %s48
    %s50 = sphi 0, %s48
    %s51 = sphi 0, %s50
    %s65 = sphi 0, %s51
    %s69 = sphi 0, %s69
    %s71 = sphi 0, %s69
    %s72 = sphi 0, %s71
    %s86 = sphi 0, %s72
    %s90 = sphi 0, %s90
    %s92 = sphi 0, %s90
    %s93 = sphi 0, %s92
    %s107 = sphi 0, %s93
    %s111 = sphi 0, %s111
    %s113 = sphi 0, %s111
    %s114 = sphi 0, %s113
    %s128 = sphi 0, %s114
    %s132 = sphi 0, %s132
    %s134 = sphi 0, %s132
    %s135 = sphi 0, %s134
    %s149 = sphi 0, %s135
    %s153 = sphi 0, %s153
    %s155 = sphi 0, %s153
    %s156 = sphi 0, %s155
    %s170 = sphi 0, %s156
    %s174 = sphi 0, %s174
    %s176 = sphi 0, %s174
    %s177 = sphi 0, %s176
    %s191 = sphi 0, %s177
    %s197 = sphi 0, %s199
    %s200 = sphi 0, %s197
    %s201 = sphi 0, %s200
    %s217 = sphi 0, %s201
  $region4: #{inverted_residual_forward.1} parent=0 // loop_header_branch
    %17 = sbr.rel (%p15) target = $region8
  $region5: #{inverted_residual_forward.1} parent=0 // loop_body
    %s19 = ssub.s32 %s14, 1
    %s20 = ssub.s32 %s14, 2
    %s21 = sadd.s32 %s14, 1
    %s22 = ssub.s32 %s14, %s21
    %p23 = scmp.eq.s32.totalorder %s22, 0
    %s25 = sadd.s32 %s24, 1
    %s26 = scalar_select %p23, %s24, %s25
    %p29 = pneg %p23
    %p30 = scmp.eq.s32.totalorder %s14, 1
    %p31 = por %p29, %p30
    %p32 = scmp.ne.s32.totalorder %s24, %s27
    %p33 = scmp.eq.s32.totalorder %s14, 0
    %p34 = por %p32, %p33
    %p35 = scmp.ne.s32.totalorder %s24, %s27
    %p36 = scmp.eq.s32.totalorder %s19, 1
    %p37 = por %p35, %p36
    %p38 = scmp.ne.s32.totalorder %s27, %s28
    %p39 = scmp.eq.s32.totalorder %s19, 0
    %p40 = por %p38, %p39
    %p41 = scmp.ne.s32.totalorder %s27, %s28
    %p42 = scmp.eq.s32.totalorder %s20, 1
    %p43 = por %p41, %p42
    %p45 = scmp.ne.s32.totalorder %s28, %s44
    %p46 = scmp.eq.s32.totalorder %s20, 0
    %p47 = por %p45, %p46
    %s49 = sadd.s32 %s48, 1
    %p52 = scmp.eq.s32.totalorder %s14, 1
    %p53 = scmp.ne.s32.totalorder %s48, %s50
    %p54 = scmp.eq.s32.totalorder %s14, 0
    %p55 = por %p53, %p54
    %p56 = scmp.ne.s32.totalorder %s48, %s50
    %p57 = scmp.eq.s32.totalorder %s19, 1
    %p58 = por %p56, %p57
    %p59 = scmp.ne.s32.totalorder %s50, %s51
    %p60 = scmp.eq.s32.totalorder %s19, 0
    %p61 = por %p59, %p60
    %p62 = scmp.ne.s32.totalorder %s50, %s51
    %p63 = scmp.eq.s32.totalorder %s20, 1
    %p64 = por %p62, %p63
    %p66 = scmp.ne.s32.totalorder %s51, %s65
    %p67 = scmp.eq.s32.totalorder %s20, 0
    %p68 = por %p66, %p67
    %s70 = sadd.s32 %s69, 1
    %p73 = scmp.eq.s32.totalorder %s14, 1
    %p74 = scmp.ne.s32.totalorder %s69, %s71
    %p75 = scmp.eq.s32.totalorder %s14, 0
    %p76 = por %p74, %p75
    %p77 = scmp.ne.s32.totalorder %s69, %s71
    %p78 = scmp.eq.s32.totalorder %s19, 1
    %p79 = por %p77, %p78
    %p80 = scmp.ne.s32.totalorder %s71, %s72
    %p81 = scmp.eq.s32.totalorder %s19, 0
    %p82 = por %p80, %p81
    %p83 = scmp.ne.s32.totalorder %s71, %s72
    %p84 = scmp.eq.s32.totalorder %s20, 1
    %p85 = por %p83, %p84
    %p87 = scmp.ne.s32.totalorder %s72, %s86
    %p88 = scmp.eq.s32.totalorder %s20, 0
    %p89 = por %p87, %p88
    %s91 = sadd.s32 %s90, 1
    %p94 = scmp.eq.s32.totalorder %s14, 1
    %p95 = scmp.ne.s32.totalorder %s90, %s92
    %p96 = scmp.eq.s32.totalorder %s14, 0
    %p97 = por %p95, %p96
    %p98 = scmp.ne.s32.totalorder %s90, %s92
    %p99 = scmp.eq.s32.totalorder %s19, 1
    %p100 = por %p98, %p99
    %p101 = scmp.ne.s32.totalorder %s92, %s93
    %p102 = scmp.eq.s32.totalorder %s19, 0
    %p103 = por %p101, %p102
    %p104 = scmp.ne.s32.totalorder %s92, %s93
    %p105 = scmp.eq.s32.totalorder %s20, 1
    %p106 = por %p104, %p105
    %p108 = scmp.ne.s32.totalorder %s93, %s107
    %p109 = scmp.eq.s32.totalorder %s20, 0
    %p110 = por %p108, %p109
    %s112 = sadd.s32 %s111, 1
    %p115 = scmp.eq.s32.totalorder %s14, 1
    %p116 = scmp.ne.s32.totalorder %s111, %s113
    %p117 = scmp.eq.s32.totalorder %s14, 0
    %p118 = por %p116, %p117
    %p119 = scmp.ne.s32.totalorder %s111, %s113
    %p120 = scmp.eq.s32.totalorder %s19, 1
    %p121 = por %p119, %p120
    %p122 = scmp.ne.s32.totalorder %s113, %s114
    %p123 = scmp.eq.s32.totalorder %s19, 0
    %p124 = por %p122, %p123
    %p125 = scmp.ne.s32.totalorder %s113, %s114
    %p126 = scmp.eq.s32.totalorder %s20, 1
    %p127 = por %p125, %p126
    %p129 = scmp.ne.s32.totalorder %s114, %s128
    %p130 = scmp.eq.s32.totalorder %s20, 0
    %p131 = por %p129, %p130
    %s133 = sadd.s32 %s132, 1
    %p136 = scmp.eq.s32.totalorder %s14, 1
    %p137 = scmp.ne.s32.totalorder %s132, %s134
    %p138 = scmp.eq.s32.totalorder %s14, 0
    %p139 = por %p137, %p138
    %p140 = scmp.ne.s32.totalorder %s132, %s134
    %p141 = scmp.eq.s32.totalorder %s19, 1
    %p142 = por %p140, %p141
    %p143 = scmp.ne.s32.totalorder %s134, %s135
    %p144 = scmp.eq.s32.totalorder %s19, 0
    %p145 = por %p143, %p144
    %p146 = scmp.ne.s32.totalorder %s134, %s135
    %p147 = scmp.eq.s32.totalorder %s20, 1
    %p148 = por %p146, %p147
    %p150 = scmp.ne.s32.totalorder %s135, %s149
    %p151 = scmp.eq.s32.totalorder %s20, 0
    %p152 = por %p150, %p151
    %s154 = sadd.s32 %s153, 1
    %p157 = scmp.eq.s32.totalorder %s14, 1
    %p158 = scmp.ne.s32.totalorder %s153, %s155
    %p159 = scmp.eq.s32.totalorder %s14, 0
    %p160 = por %p158, %p159
    %p161 = scmp.ne.s32.totalorder %s153, %s155
    %p162 = scmp.eq.s32.totalorder %s19, 1
    %p163 = por %p161, %p162
    %p164 = scmp.ne.s32.totalorder %s155, %s156
    %p165 = scmp.eq.s32.totalorder %s19, 0
    %p166 = por %p164, %p165
    %p167 = scmp.ne.s32.totalorder %s155, %s156
    %p168 = scmp.eq.s32.totalorder %s20, 1
    %p169 = por %p167, %p168
    %p171 = scmp.ne.s32.totalorder %s156, %s170
    %p172 = scmp.eq.s32.totalorder %s20, 0
    %p173 = por %p171, %p172
    %s175 = sadd.s32 %s174, 1
    %p178 = scmp.eq.s32.totalorder %s14, 1
    %p179 = scmp.ne.s32.totalorder %s174, %s176
    %p180 = scmp.eq.s32.totalorder %s14, 0
    %p181 = por %p179, %p180
    %p182 = scmp.ne.s32.totalorder %s174, %s176
    %p183 = scmp.eq.s32.totalorder %s19, 1
    %p184 = por %p182, %p183
    %p185 = scmp.ne.s32.totalorder %s176, %s177
    %p186 = scmp.eq.s32.totalorder %s19, 0
    %p187 = por %p185, %p186
    %p188 = scmp.ne.s32.totalorder %s176, %s177
    %p189 = scmp.eq.s32.totalorder %s20, 1
    %p190 = por %p188, %p189
    %p192 = scmp.ne.s32.totalorder %s177, %s191
    %p193 = scmp.eq.s32.totalorder %s20, 0
    %p194 = por %p192, %p193
    %s195 = ssub.s32 %s14, %s21
    %p196 = scmp.eq.s32.totalorder %s195, 0
    %s198 = sadd.s32 %s197, 1
    %s199 = scalar_select %p196, %s197, %s198
    %p202 = pneg %p196
    %p203 = scmp.eq.s32.totalorder %s14, 1
    %p204 = por %p202, %p203
    %p205 = scmp.ne.s32.totalorder %s197, %s200
    %p206 = scmp.eq.s32.totalorder %s14, 0
    %p207 = por %p205, %p206
    %p208 = scmp.ne.s32.totalorder %s197, %s200
    %p209 = scmp.eq.s32.totalorder %s19, 1
    %p210 = por %p208, %p209
    %p211 = scmp.ne.s32.totalorder %s200, %s201
    %p212 = scmp.eq.s32.totalorder %s19, 0
    %p213 = por %p211, %p212
    %p214 = scmp.ne.s32.totalorder %s200, %s201
    %p215 = scmp.eq.s32.totalorder %s20, 1
    %p216 = por %p214, %p215
    %p218 = scmp.ne.s32.totalorder %s201, %s217
    %p219 = scmp.eq.s32.totalorder %s20, 0
    %p220 = por %p218, %p219
    %p221 = scmp.le.s32.totalorder 1, %s14
    %p222 = scmp.lt.s32.totalorder %s14, 3
    %p223 = pnand %p221, %p222
    %p224 = pneg %p223
    // Predicated region
    $region9: #{inverted_residual_forward.1} parent=5 // pred_check
      _
    $region10: #{inverted_residual_forward.1} parent=5 // pred_check_branch
      %226 = sbr.rel (%p223) target = $region12
    $region11: #{inverted_residual_forward.1} parent=5 // pred_region
      %s227 = ssub.s32 %s14, 1
      // Predicated region
      $region13: #{inverted_residual_forward.1} parent=11 // pred_check
        %p228 = pneg %p61
      $region14: #{inverted_residual_forward.1} parent=11 // pred_check_branch
        %230 = sbr.rel (%p228) target = $region16
      $region15: #{inverted_residual_forward.1} parent=11 // pred_region
        _
      $region16: #{inverted_residual_forward.1} parent=11 // pred_fallthru
        _
      // Predicated region
      $region17: #{inverted_residual_forward.1} parent=11 // pred_check
        %p231 = pneg %p82
      $region18: #{inverted_residual_forward.1} parent=11 // pred_check_branch
        %233 = sbr.rel (%p231) target = $region20
      $region19: #{inverted_residual_forward.1} parent=11 // pred_region
        _
      $region20: #{inverted_residual_forward.1} parent=11 // pred_fallthru
        _
      // Predicated region
      $region21: #{inverted_residual_forward.1} parent=11 // pred_check
        %p234 = pneg %p103
      $region22: #{inverted_residual_forward.1} parent=11 // pred_check_branch
        %236 = sbr.rel (%p234) target = $region24
      $region23: #{inverted_residual_forward.1} parent=11 // pred_region
        _
      $region24: #{inverted_residual_forward.1} parent=11 // pred_fallthru
        _
      // Predicated region
      $region25: #{inverted_residual_forward.1} parent=11 // pred_check
        %p237 = pneg %p124
      $region26: #{inverted_residual_forward.1} parent=11 // pred_check_branch
        %239 = sbr.rel (%p237) target = $region28
      $region27: #{inverted_residual_forward.1} parent=11 // pred_region
        _
      $region28: #{inverted_residual_forward.1} parent=11 // pred_fallthru
        _
      // Predicated region
      $region29: #{inverted_residual_forward.1} parent=11 // pred_check
        %p240 = pneg %p145
      $region30: #{inverted_residual_forward.1} parent=11 // pred_check_branch
        %242 = sbr.rel (%p240) target = $region32
      $region31: #{inverted_residual_forward.1} parent=11 // pred_region
        _
      $region32: #{inverted_residual_forward.1} parent=11 // pred_fallthru
        _
      // Predicated region
      $region33: #{inverted_residual_forward.1} parent=11 // pred_check
        %p243 = pneg %p166
      $region34: #{inverted_residual_forward.1} parent=11 // pred_check_branch
        %245 = sbr.rel (%p243) target = $region36
      $region35: #{inverted_residual_forward.1} parent=11 // pred_region
        _
      $region36: #{inverted_residual_forward.1} parent=11 // pred_fallthru
        _
      // Predicated region
      $region37: #{inverted_residual_forward.1} parent=11 // pred_check
        %p246 = pneg %p187
      $region38: #{inverted_residual_forward.1} parent=11 // pred_check_branch
        %248 = sbr.rel (%p246) target = $region40
      $region39: #{inverted_residual_forward.1} parent=11 // pred_region
        _
      $region40: #{inverted_residual_forward.1} parent=11 // pred_fallthru
        _
    $region12: #{inverted_residual_forward.1} parent=5 // pred_fallthru
      _
    %p249 = scmp.lt.s32.totalorder %s14, 2
    // Predicated region
    $region41: #{inverted_residual_forward.1} parent=5 // pred_check
      %p250 = pneg %p249
    $region42: #{inverted_residual_forward.1} parent=5 // pred_check_branch
      %252 = sbr.rel (%p250) target = $region44
    $region43: #{inverted_residual_forward.1} parent=5 // pred_region
      // Predicated region
      $region45: #{inverted_residual_forward.1} parent=43 // pred_check
        %p253 = pneg %p34
      $region46: #{inverted_residual_forward.1} parent=43 // pred_check_branch
        %255 = sbr.rel (%p253) target = $region48
      $region47: #{inverted_residual_forward.1} parent=43 // pred_region
        %p256 = scmp.lt.s32.totalorder %s14, 1
        %s257 = scalar_select %p256, %s14, 1
        %s258 = smul.addr %s257, 3
        %s259 = smul.addr %s258, 4
        %s260 = scalar_lea.vmem %s0, %s259
      $region48: #{inverted_residual_forward.1} parent=43 // pred_fallthru
        _
    $region44: #{inverted_residual_forward.1} parent=5 // pred_fallthru
      _
    %p261 = scmp.le.s32.totalorder 1, %s14
    %p262 = scmp.lt.s32.totalorder %s14, 3
    %p263 = pnand %p261, %p262
    %p264 = pneg %p263
    // Predicated region
    $region49: #{inverted_residual_forward.1} parent=5 // pred_check
      _
    $region50: #{inverted_residual_forward.1} parent=5 // pred_check_branch
      %266 = sbr.rel (%p263) target = $region52
    $region51: #{inverted_residual_forward.1} parent=5 // pred_region
      %s267 = ssub.s32 %s14, 1
      %p268 = scmp.lt.s32.totalorder %s19, 1
      %s269 = scalar_select %p268, %s19, 1
      %s270 = smul.addr %s269, 3
      %s271 = smul.addr %s270, 4
      %s272 = scalar_lea.vmem %s0, %s271
      %p273 = pneg %p40
      %p274 = pneg %p37
      %p275 = pneg %p61
      %p276 = pneg %p58
      %p277 = pneg %p82
      %p278 = pneg %p79
      %p279 = pneg %p103
      %p280 = pneg %p100
      %p281 = pneg %p124
      %p282 = pneg %p121
      %p283 = pneg %p145
      %p284 = pneg %p142
      %p285 = pneg %p166
      %p286 = pneg %p163
      %p287 = pneg %p187
      %p288 = pneg %p184
      %p289 = pneg %p213
      %p290 = pneg %p210
      %p291 = scmp.lt.s32.totalorder %s19, 1
      %s292 = scalar_select %p291, %s19, 1
      %s293 = smul.addr %s292, 3
      %s294 = smul.addr %s293, 4
      %s295 = scalar_lea.vmem %s8, %s294
      %p296 = scmp.lt.s32.totalorder %s19, 1
      %s297 = scalar_select %p296, %s19, 1
      %s298 = smul.addr %s297, 3
      %s299 = smul.addr %s298, 4
      %s300 = scalar_lea.vmem %s0, %s299
      %p301 = scmp.lt.s32.totalorder %s19, 1
      %s302 = scalar_select %p301, %s19, 1
      %s303 = smul.addr %s302, 3
      %s304 = smul.addr %s303, 4
      %s305 = scalar_lea.vmem %s8, %s304
      %v307 = vld [vmem:[%s300] sm:$0xff]
      %v308 = vld [vmem:[%s300 + $0x8] sm:$0xf]
      %v309 = vld [vmem:[%s2] sm:$0xf]
      %v311 = vcombine.high %v307, %v307
      %v313 = vpack.c.bf16 %v307, %v307
      %v314 = vpack.c.bf16 %v311, %v311
      %v315 = vpack.c.bf16 %v308, %v308
      %v316 = vld [vmem:[%s3] sm:$0xff]
      %318 = vset.pattern.permute.xlu0 0
      %319 = vperm.xlu0 %318, %v316
      %v320 = vpop.permute.xlu0 %319
      %vm322 = vcmask 31744
      %v324 = vsel %vm322, %v309, 0
      %vm326 = vcmask 1041408
      %v328 = vsel %vm326, %v313, 0
      %v331 = vsel %vm326, %v314, 0
      %v334 = vsel %vm326, %v315, 0
      %336 = vmatprep.subr.bf16.mxu0 %v331
      %337 = vmatpush1.bf16.msra.mxu0 %v328
      %338 = vmatprep.subr.bf16.mxu0 0
      %339 = vmatpush1.bf16.msra.mxu0 0
      %340 = vmatprep.subr.bf16.mxu0 0
      %341 = vmatpush1.bf16.msra.mxu0 0
      %342 = vmatprep.subr.bf16.mxu0 0
      %343 = vmatpush1.bf16.msra.mxu0 0
      %344 = vmatprep.subr.bf16.mxu0 0
      %345 = vmatpush1.bf16.msra.mxu0 0
      %346 = vmatprep.subr.bf16.mxu0 0
      %347 = vmatpush1.bf16.msra.mxu0 0
      %348 = vmatprep.subr.bf16.mxu0 0
      %349 = vmatpush1.bf16.msra.mxu0 0
      %350 = vmatprep.subr.bf16.mxu0 0
      %351 = vmatpush1.bf16.msra.mxu0 0
      %352 = vmatprep.subr.bf16.mxu0 0
      %353 = vmatpush1.bf16.msra.mxu0 0
      %354 = vmatprep.subr.bf16.mxu0 0
      %355 = vmatpush1.bf16.msra.mxu0 0
      %356 = vmatprep.subr.bf16.mxu0 0
      %357 = vmatpush1.bf16.msra.mxu0 0
      %358 = vmatprep.subr.bf16.mxu0 0
      %359 = vmatpush1.bf16.msra.mxu0 0
      %360 = vmatprep.subr.bf16.mxu0 0
      %361 = vmatpush1.bf16.msra.mxu0 0
      %362 = vmatprep.subr.bf16.mxu0 0
      %363 = vmatpush1.bf16.msra.mxu0 0
      %364 = vmatprep.subr.bf16.mxu0 0
      %365 = vmatpush1.bf16.msra.mxu0 0
      %366 = vmatprep.subr.bf16.mxu0 0
      %367 = vmatpush1.bf16.msra.mxu0 0
      %368 = vmatprep.mubr.bf16.mxu0 0
      %369 = vmatmul.mubr.bf16.gmra.mrb[0].mxu0 %v324
      %v370 = vpop.f32.mrb[0].mxu0
      %v371 = vadd.f32 %v320, %v370
      %v372 = vpop.f32.mrb[0].mxu0
      %v373 = vadd.f32 %v320, %v372
      %v374 = vpop.f32.mrb[0].mxu0
      %v375 = vpop.f32.mrb[0].mxu0
      %376 = vdwg.mxu0
      %377 = vmatprep.subr.bf16.mxu0 0
      %378 = vmatpush1.bf16.msra.mxu0 %v334
      %379 = vmatprep.subr.bf16.mxu0 0
      %380 = vmatpush1.bf16.msra.mxu0 0
      %381 = vmatprep.subr.bf16.mxu0 0
      %382 = vmatpush1.bf16.msra.mxu0 0
      %383 = vmatprep.subr.bf16.mxu0 0
      %384 = vmatpush1.bf16.msra.mxu0 0
      %385 = vmatprep.subr.bf16.mxu0 0
      %386 = vmatpush1.bf16.msra.mxu0 0
      %387 = vmatprep.subr.bf16.mxu0 0
      %388 = vmatpush1.bf16.msra.mxu0 0
      %389 = vmatprep.subr.bf16.mxu0 0
      %390 = vmatpush1.bf16.msra.mxu0 0
      %391 = vmatprep.subr.bf16.mxu0 0
      %392 = vmatpush1.bf16.msra.mxu0 0
      %393 = vmatprep.subr.bf16.mxu0 0
      %394 = vmatpush1.bf16.msra.mxu0 0
      %395 = vmatprep.subr.bf16.mxu0 0
      %396 = vmatpush1.bf16.msra.mxu0 0
      %397 = vmatprep.subr.bf16.mxu0 0
      %398 = vmatpush1.bf16.msra.mxu0 0
      %399 = vmatprep.subr.bf16.mxu0 0
      %400 = vmatpush1.bf16.msra.mxu0 0
      %401 = vmatprep.subr.bf16.mxu0 0
      %402 = vmatpush1.bf16.msra.mxu0 0
      %403 = vmatprep.subr.bf16.mxu0 0
      %404 = vmatpush1.bf16.msra.mxu0 0
      %405 = vmatprep.subr.bf16.mxu0 0
      %406 = vmatpush1.bf16.msra.mxu0 0
      %407 = vmatprep.subr.bf16.mxu0 0
      %408 = vmatpush1.bf16.msra.mxu0 0
      %409 = vmatprep.mubr.bf16.mxu0 0
      %410 = vmatmul.mubr.bf16.gmra.mrb[0].mxu0 %v324
      %v411 = vpop.f32.mrb[0].mxu0
      %v412 = vadd.f32 %v320, %v411
      %v413 = vpop.f32.mrb[0].mxu0
      %v414 = vpop.f32.mrb[0].mxu0
      %v415 = vpop.f32.mrb[0].mxu0
      %416 = vdwg.mxu0
      %v417 = vmax.f32 %v371, 0.0
      %v418 = vmax.f32 %v373, 0.0
      %v419 = vmax.f32 %v412, 0.0
      %v420 = vmin.f32 %v417, 6.0
      %v421 = vmin.f32 %v418, 6.0
      %v422 = vmin.f32 %v419, 6.0
      %v423 = vld [vmem:[%s1] sm:$0x7]
      %v425 = vlaneseq
      %v426 = vshrl.u32 %v425, 7
      %v427 = vsub.s32 0, %v426
      %v428 = vrot.slane %v423, %v427
      %v429 = vlaneseq
      %v430 = vshrl.u32 %v429, 7
      %v431 = vsub.s32 1, %v430
      %v432 = vrot.slane %v423, %v431
      %v433 = vlaneseq
      %v434 = vshrl.u32 %v433, 7
      %v435 = vsub.s32 2, %v434
      %v436 = vrot.slane %v423, %v435
      %v440 = vmul.f32 %v420, %v428
      %v441 = vmul.f32 %v421, %v432
      %v442 = vmul.f32 %v422, %v436
      %v443 = vpack.c.bf16 %v440, %v440
      %v444 = vpack.c.bf16 %v441, %v441
      %v445 = vpack.c.bf16 %v442, %v442
      %v449 = vunpack.c.l.b16 %v443
      %v450 = vunpack.c.l.b16 %v444
      %v451 = vunpack.c.l.b16 %v445
      %v452 = vpack.c.b16 %v450, %v449
      %v453 = vpack.c.b16 %v451, %v451
      %456 = vst [vmem:[#allocation2] sm:$0xff] %v452
      %vm457 = vcmask 699392
      %458 = vst.msk [vmem:[#allocation2 + $0x8] sm:$0xf] %vm457, %v453
      %v459 = vld [vmem:[%s4] sm:$0xff]
      %v460 = vld [vmem:[#allocation2] sm:$0xff]
      %v461 = vld [vmem:[#allocation2 + $0x8] sm:$0xf]
      %v462 = vunpack.c.l.bf16 %v460
      %v463 = vunpack.c.h.bf16 %v460
      %v464 = vunpack.c.l.bf16 %v461
      %466 = vset.pattern.permute.xlu0 0
      %467 = vperm.xlu0 %466, %v459
      %v468 = vpop.permute.xlu0 %467
      %v470 = vmul.f32 %v462, %v468
      %v471 = vmul.f32 %v463, %v468
      %v472 = vmul.f32 %v464, %v468
      %v473 = vadd.f32 %v470, 0.0
      %v474 = vadd.f32 %v471, 0.0
      %v475 = vadd.f32 %v472, 0.0
      %476 = vset.pattern.permute.xlu0 1
      %477 = vperm.xlu0 %476, %v459
      %v478 = vpop.permute.xlu0 %477
      %v480 = vmul.f32 %v462, %v478
      %v481 = vmul.f32 %v463, %v478
      %v482 = vmul.f32 %v464, %v478
      %486 = vrot.lane.b32.xlu0 %v480, 127
      %v487 = vpop.permute.xlu0 %486
      %488 = vrot.lane.b32.xlu0 %v481, 127
      %v489 = vpop.permute.xlu0 %488
      %490 = vrot.lane.b32.xlu0 %v482, 127
      %v491 = vpop.permute.xlu0 %490
      %vm492 = vcmask 1039360
      %v493 = vsel %vm492, %v487, %v489
      %v494 = vsel %vm492, %v489, %v491
      %v498 = vadd.f32 %v473, %v493
      %v499 = vadd.f32 %v474, %v494
      %v500 = vadd.f32 %v475, %v491
      %501 = vset.pattern.permute.xlu0 2
      %502 = vperm.xlu0 %501, %v459
      %v503 = vpop.permute.xlu0 %502
      %v505 = vmul.f32 %v462, %v503
      %v506 = vmul.f32 %v463, %v503
      %v507 = vmul.f32 %v464, %v503
      %511 = vrot.lane.b32.xlu0 %v505, 126
      %v512 = vpop.permute.xlu0 %511
      %513 = vrot.lane.b32.xlu0 %v506, 126
      %v514 = vpop.permute.xlu0 %513
      %515 = vrot.lane.b32.xlu0 %v507, 126
      %v516 = vpop.permute.xlu0 %515
      %vm517 = vcmask 1031168
      %v518 = vsel %vm517, %v512, %v514
      %v519 = vsel %vm517, %v514, %v516
      %v523 = vadd.f32 %v498, %v518
      %v524 = vadd.f32 %v499, %v519
      %v525 = vadd.f32 %v500, %v516
      %526 = vset.pattern.permute.xlu0 3
      %527 = vperm.xlu0 %526, %v459
      %v528 = vpop.permute.xlu0 %527
      %v530 = vmul.f32 %v462, %v528
      %v531 = vmul.f32 %v463, %v528
      %v532 = vmul.f32 %v464, %v528
      %536 = vrot.lane.b32.xlu0 %v530, 110
      %v537 = vpop.permute.xlu0 %536
      %538 = vrot.lane.b32.xlu0 %v531, 110
      %v539 = vpop.permute.xlu0 %538
      %540 = vrot.lane.b32.xlu0 %v532, 110
      %v541 = vpop.permute.xlu0 %540
      %vm542 = vcmask 900096
      %v543 = vsel %vm542, %v537, %v539
      %v544 = vsel %vm542, %v539, %v541
      %v548 = vadd.f32 %v523, %v543
      %v549 = vadd.f32 %v524, %v544
      %v550 = vadd.f32 %v525, %v541
      %551 = vset.pattern.permute.xlu0 4
      %552 = vperm.xlu0 %551, %v459
      %v553 = vpop.permute.xlu0 %552
      %v555 = vmul.f32 %v462, %v553
      %v556 = vmul.f32 %v463, %v553
      %v557 = vmul.f32 %v464, %v553
      %561 = vrot.lane.b32.xlu0 %v555, 109
      %v562 = vpop.permute.xlu0 %561
      %563 = vrot.lane.b32.xlu0 %v556, 109
      %v564 = vpop.permute.xlu0 %563
      %565 = vrot.lane.b32.xlu0 %v557, 109
      %v566 = vpop.permute.xlu0 %565
      %vm567 = vcmask 891904
      %v568 = vsel %vm567, %v562, %v564
      %v569 = vsel %vm567, %v564, %v566
      %v573 = vadd.f32 %v548, %v568
      %v574 = vadd.f32 %v549, %v569
      %v575 = vadd.f32 %v550, %v566
      %576 = vset.pattern.permute.xlu0 5
      %577 = vperm.xlu0 %576, %v459
      %v578 = vpop.permute.xlu0 %577
      %v580 = vmul.f32 %v462, %v578
      %v581 = vmul.f32 %v463, %v578
      %v582 = vmul.f32 %v464, %v578
      %586 = vrot.lane.b32.xlu0 %v580, 108
      %v587 = vpop.permute.xlu0 %586
      %588 = vrot.lane.b32.xlu0 %v581, 108
      %v589 = vpop.permute.xlu0 %588
      %590 = vrot.lane.b32.xlu0 %v582, 108
      %v591 = vpop.permute.xlu0 %590
      %vm592 = vcmask 883712
      %v593 = vsel %vm592, %v587, %v589
      %v594 = vsel %vm592, %v589, %v591
      %v598 = vadd.f32 %v573, %v593
      %v599 = vadd.f32 %v574, %v594
      %v600 = vadd.f32 %v575, %v591
      %601 = vset.pattern.permute.xlu0 6
      %602 = vperm.xlu0 %601, %v459
      %v603 = vpop.permute.xlu0 %602
      %v605 = vmul.f32 %v462, %v603
      %v606 = vmul.f32 %v463, %v603
      %v607 = vmul.f32 %v464, %v603
      %611 = vrot.lane.b32.xlu0 %v605, 92
      %v612 = vpop.permute.xlu0 %611
      %613 = vrot.lane.b32.xlu0 %v606, 92
      %v614 = vpop.permute.xlu0 %613
      %615 = vrot.lane.b32.xlu0 %v607, 92
      %v616 = vpop.permute.xlu0 %615
      %vm617 = vcmask 752640
      %v618 = vsel %vm617, %v612, %v614
      %v619 = vsel %vm617, %v614, %v616
      %v623 = vadd.f32 %v598, %v618
      %v624 = vadd.f32 %v599, %v619
      %v625 = vadd.f32 %v600, %v616
      %626 = vset.pattern.permute.xlu0 7
      %627 = vperm.xlu0 %626, %v459
      %v628 = vpop.permute.xlu0 %627
      %v630 = vmul.f32 %v462, %v628
      %v631 = vmul.f32 %v463, %v628
      %v632 = vmul.f32 %v464, %v628
      %636 = vrot.lane.b32.xlu0 %v630, 91
      %v637 = vpop.permute.xlu0 %636
      %638 = vrot.lane.b32.xlu0 %v631, 91
      %v639 = vpop.permute.xlu0 %638
      %640 = vrot.lane.b32.xlu0 %v632, 91
      %v641 = vpop.permute.xlu0 %640
      %vm642 = vcmask 744448
      %v643 = vsel %vm642, %v637, %v639
      %v644 = vsel %vm642, %v639, %v641
      %v648 = vadd.f32 %v623, %v643
      %v649 = vadd.f32 %v624, %v644
      %v650 = vadd.f32 %v625, %v641
      %651 = vset.pattern.permute.xlu0 8
      %652 = vperm.xlu0 %651, %v459
      %v653 = vpop.permute.xlu0 %652
      %v655 = vmul.f32 %v462, %v653
      %v656 = vmul.f32 %v463, %v653
      %v657 = vmul.f32 %v464, %v653
      %661 = vrot.lane.b32.xlu0 %v655, 90
      %v662 = vpop.permute.xlu0 %661
      %663 = vrot.lane.b32.xlu0 %v656, 90
      %v664 = vpop.permute.xlu0 %663
      %665 = vrot.lane.b32.xlu0 %v657, 90
      %v666 = vpop.permute.xlu0 %665
      %vm667 = vcmask 736256
      %v668 = vsel %vm667, %v662, %v664
      %v669 = vsel %vm667, %v664, %v666
      %v673 = vadd.f32 %v648, %v668
      %v674 = vadd.f32 %v649, %v669
      %v675 = vadd.f32 %v650, %v666
      %v676 = vld [vmem:[%s5] sm:$0xff]
      %678 = vset.pattern.permute.xlu0 0
      %679 = vperm.xlu0 %678, %v676
      %v680 = vpop.permute.xlu0 %679
      %v682 = vadd.f32 %v673, %v680
      %v683 = vadd.f32 %v674, %v680
      %v684 = vadd.f32 %v675, %v680
      %v685 = vmax.f32 %v682, 0.0
      %v686 = vmax.f32 %v683, 0.0
      %v687 = vmax.f32 %v684, 0.0
      %v688 = vmin.f32 %v685, 6.0
      %v689 = vmin.f32 %v686, 6.0
      %v690 = vmin.f32 %v687, 6.0
      %v691 = vld [vmem:[%s6] sm:$0x3]
      %v692 = vpack.c.bf16 %v688, %v688
      %v693 = vpack.c.bf16 %v689, %v689
      %v694 = vpack.c.bf16 %v690, %v690
      %v695 = vld [vmem:[%s7] sm:$0xf]
      %697 = vset.pattern.permute.xlu0 0
      %698 = vperm.xlu0 %697, %v695
      %v699 = vpop.permute.xlu0 %698
      %vm701 = vcmask 64512
      %v703 = vsel %vm701, %v691, 0
      %vm705 = vcmask 1043456
      %v707 = vsel %vm705, %v692, 0
      %v710 = vsel %vm705, %v693, 0
      %v713 = vsel %vm705, %v694, 0
      %715 = vmatprep.subr.bf16.mxu0 %v710
      %716 = vmatpush1.bf16.msra.mxu0 %v707
      %717 = vmatprep.subr.bf16.mxu0 0
      %718 = vmatpush1.bf16.msra.mxu0 0
      %719 = vmatprep.subr.bf16.mxu0 0
      %720 = vmatpush1.bf16.msra.mxu0 0
      %721 = vmatprep.subr.bf16.mxu0 0
      %722 = vmatpush1.bf16.msra.mxu0 0
      %723 = vmatprep.subr.bf16.mxu0 0
      %724 = vmatpush1.bf16.msra.mxu0 0
      %725 = vmatprep.subr.bf16.mxu0 0
      %726 = vmatpush1.bf16.msra.mxu0 0
      %727 = vmatprep.subr.bf16.mxu0 0
      %728 = vmatpush1.bf16.msra.mxu0 0
      %729 = vmatprep.subr.bf16.mxu0 0
      %730 = vmatpush1.bf16.msra.mxu0 0
      %731 = vmatprep.subr.bf16.mxu0 0
      %732 = vmatpush1.bf16.msra.mxu0 0
      %733 = vmatprep.subr.bf16.mxu0 0
      %734 = vmatpush1.bf16.msra.mxu0 0
      %735 = vmatprep.subr.bf16.mxu0 0
      %736 = vmatpush1.bf16.msra.mxu0 0
      %737 = vmatprep.subr.bf16.mxu0 0
      %738 = vmatpush1.bf16.msra.mxu0 0
      %739 = vmatprep.subr.bf16.mxu0 0
      %740 = vmatpush1.bf16.msra.mxu0 0
      %741 = vmatprep.subr.bf16.mxu0 0
      %742 = vmatpush1.bf16.msra.mxu0 0
      %743 = vmatprep.subr.bf16.mxu0 0
      %744 = vmatpush1.bf16.msra.mxu0 0
      %745 = vmatprep.subr.bf16.mxu0 0
      %746 = vmatpush1.bf16.msra.mxu0 0
      %747 = vmatprep.mubr.bf16.mxu0 0
      %748 = vmatmul.mubr.bf16.gmra.mrb[0].mxu0 %v703
      %v749 = vpop.f32.mrb[0].mxu0
      %v750 = vadd.f32 %v699, %v749
      %v751 = vpop.f32.mrb[0].mxu0
      %v752 = vadd.f32 %v699, %v751
      %v753 = vpop.f32.mrb[0].mxu0
      %v754 = vpop.f32.mrb[0].mxu0
      %755 = vdwg.mxu0
      %756 = vmatprep.subr.bf16.mxu0 0
      %757 = vmatpush1.bf16.msra.mxu0 %v713
      %758 = vmatprep.subr.bf16.mxu0 0
      %759 = vmatpush1.bf16.msra.mxu0 0
      %760 = vmatprep.subr.bf16.mxu0 0
      %761 = vmatpush1.bf16.msra.mxu0 0
      %762 = vmatprep.subr.bf16.mxu0 0
      %763 = vmatpush1.bf16.msra.mxu0 0
      %764 = vmatprep.subr.bf16.mxu0 0
      %765 = vmatpush1.bf16.msra.mxu0 0
      %766 = vmatprep.subr.bf16.mxu0 0
      %767 = vmatpush1.bf16.msra.mxu0 0
      %768 = vmatprep.subr.bf16.mxu0 0
      %769 = vmatpush1.bf16.msra.mxu0 0
      %770 = vmatprep.subr.bf16.mxu0 0
      %771 = vmatpush1.bf16.msra.mxu0 0
      %772 = vmatprep.subr.bf16.mxu0 0
      %773 = vmatpush1.bf16.msra.mxu0 0
      %774 = vmatprep.subr.bf16.mxu0 0
      %775 = vmatpush1.bf16.msra.mxu0 0
      %776 = vmatprep.subr.bf16.mxu0 0
      %777 = vmatpush1.bf16.msra.mxu0 0
      %778 = vmatprep.subr.bf16.mxu0 0
      %779 = vmatpush1.bf16.msra.mxu0 0
      %780 = vmatprep.subr.bf16.mxu0 0
      %781 = vmatpush1.bf16.msra.mxu0 0
      %782 = vmatprep.subr.bf16.mxu0 0
      %783 = vmatpush1.bf16.msra.mxu0 0
      %784 = vmatprep.subr.bf16.mxu0 0
      %785 = vmatpush1.bf16.msra.mxu0 0
      %786 = vmatprep.subr.bf16.mxu0 0
      %787 = vmatpush1.bf16.msra.mxu0 0
      %788 = vmatprep.mubr.bf16.mxu0 0
      %789 = vmatmul.mubr.bf16.gmra.mrb[0].mxu0 %v703
      %v790 = vpop.f32.mrb[0].mxu0
      %v791 = vadd.f32 %v699, %v790
      %v792 = vpop.f32.mrb[0].mxu0
      %v793 = vpop.f32.mrb[0].mxu0
      %v794 = vpop.f32.mrb[0].mxu0
      %795 = vdwg.mxu0
      %v796 = vld [vmem:[%s300] sm:$0xff]
      %v797 = vld [vmem:[%s300 + $0x8] sm:$0xf]
      %v800 = vcombine.high %v796, %v796
      %801 = vrot.lane.b32.xlu0 %v796, 109
      %v802 = vpop.permute.xlu0 %801
      %803 = vrot.lane.b32.xlu0 %v800, 109
      %v804 = vpop.permute.xlu0 %803
      %805 = vrot.lane.b32.xlu0 %v797, 109
      %v806 = vpop.permute.xlu0 %805
      %v807 = vsel %vm567, %v802, %v804
      %v808 = vsel %vm567, %v804, %v806
      %v812 = vadd.f32 %v750, %v807
      %v813 = vadd.f32 %v752, %v808
      %v814 = vadd.f32 %v791, %v806
      %v817 = vcombine.low %v812, %v813
      %819 = vst [vmem:[%s305] sm:$0xff] %v817
      %vm820 = vcmask 257024
      %821 = vst.msk [vmem:[%s305 + $0x8] sm:$0xf] %vm820, %v814
      %p822 = scmp.lt.s32.totalorder %s19, 1
      %s823 = scalar_select %p822, %s19, 1
      %s824 = smul.addr %s823, 3
      %s825 = smul.addr %s824, 4
      %s826 = scalar_lea.vmem %s8, %s825
      // Predicated region
      $region53: #{inverted_residual_forward.1} parent=51 // pred_check
        %p827 = pneg %p210
      $region54: #{inverted_residual_forward.1} parent=51 // pred_check_branch
        %829 = sbr.rel (%p827) target = $region56
      $region55: #{inverted_residual_forward.1} parent=51 // pred_region
        _
      $region56: #{inverted_residual_forward.1} parent=51 // pred_fallthru
        _
    $region52: #{inverted_residual_forward.1} parent=5 // pred_fallthru
      _
    %p830 = scmp.le.s32.totalorder 2, %s14
    // Predicated region
    $region57: #{inverted_residual_forward.1} parent=5 // pred_check
      %p831 = pneg %p830
    $region58: #{inverted_residual_forward.1} parent=5 // pred_check_branch
      %833 = sbr.rel (%p831) target = $region60
    $region59: #{inverted_residual_forward.1} parent=5 // pred_region
      %s834 = ssub.s32 %s14, 2
      // Predicated region
      $region61: #{inverted_residual_forward.1} parent=59 // pred_check
        %p835 = pneg %p216
      $region62: #{inverted_residual_forward.1} parent=59 // pred_check_branch
        %837 = sbr.rel (%p835) target = $region64
      $region63: #{inverted_residual_forward.1} parent=59 // pred_region
        %p838 = scmp.lt.s32.totalorder %s20, 1
        %s839 = scalar_select %p838, %s20, 1
        %s840 = smul.addr %s839, 3
        %s841 = smul.addr %s840, 4
        %s842 = scalar_lea.vmem %s8, %s841
      $region64: #{inverted_residual_forward.1} parent=59 // pred_fallthru
        _
    $region60: #{inverted_residual_forward.1} parent=5 // pred_fallthru
      _
  $region6: #{inverted_residual_forward.1} parent=0 // loop_footer
    %s18 = sadd.s32 1, %s14
  $region7: #{inverted_residual_forward.1} parent=0 // loop_footer_branch
    %13 = sbr.rel target = $region3
  $region8: #{inverted_residual_forward.1} parent=0 // loop_exit
    _

</llo_original>
